<compile_context>
chip_gen: v5e
topology: v5e:2x2
jax: 0.10.0
libtpu: 0.0.40
codegen_flags: <defaults>
</compile_context>

<pallas_src>
import jax
import jax.numpy as jnp
from jax.experimental import pallas as pl
from jax.experimental.pallas import tpu as pltpu


def palayer_kernel(x_ref, w1t_ref, b1_ref, w2_ref, b2_ref, o_ref):
    # x_ref/o_ref: (nb, C, tk) input dtype; w1t_ref: (Ch, C) input dtype;
    # b1_ref/w2_ref: (Ch, 1) f32; b2_ref: (1,) f32 scalar in SMEM.
    nb = x_ref.shape[0]
    w1t = w1t_ref[...]
    b1 = b1_ref[...]
    w2 = w2_ref[...]
    b2 = b2_ref[0]

    def body(b, carry):
        x = x_ref[b]                                                # (C, tk)
        # 1x1 conv #1: contract over channels on the MXU, f32 accumulate.
        h = jnp.dot(w1t, x, preferred_element_type=jnp.float32)    # (Ch, tk)
        h = jnp.maximum(h + b1, 0.0)                                # bias + ReLU
        # 1x1 conv #2 (Ch -> 1): VPU multiply + sublane reduce.
        y = jnp.sum(h * w2, axis=0, keepdims=True) + b2             # (1, tk)
        y = jax.nn.sigmoid(y)
        # Pixel attention: broadcast over channels, stay in input dtype.
        o_ref[b] = x * y.astype(o_ref.dtype)
        return carry

    jax.lax.fori_loop(0, nb, body, 0, unroll=nb <= 8)


def palayer(x_nchw, w1, b1, w2, b2):
    """x_nchw: (N, C, H, W). w1: (C, Ch), b1: (Ch,), w2: (Ch, 1), b2: (1,)."""
    N, C, H, W = x_nchw.shape
    Ch = w1.shape[1]
    assert Ch >= 1, "channel must be >= 8 so that channel // 8 >= 1"
    HW = H * W
    itemsize = jnp.dtype(x_nchw.dtype).itemsize

    # --- generation-aware memory / step sizing -------------------------------
    try:
        vmem_cap = int(pltpu.get_tpu_info().vmem_capacity_bytes)
    except Exception:
        vmem_cap = 64 << 20                      # conservative (v7x) fallback
    small_vmem = vmem_cap < (96 << 20)           # v7x: 64 MiB, 2 TCs, ~3.2 TB/s
    vmem_budget = vmem_cap // 3
    # Per-step HBM byte target (read + write of x): large enough to amortize
    # the ~0.35 us per-step overhead, small enough to double-buffer easily.
    target_step_bytes = (8 << 20) if small_vmem else (4 << 20)

    # VMEM bytes per (image, pixel) unit of a block: double-buffered in/out
    # tiles + one result temp (input dtype), f32 (Ch, tk) intermediates, f32 y.
    per_unit_bytes = 5 * C * itemsize + 8 * Ch + 8

    units_target = max(128, target_step_bytes // (2 * C * itemsize))
    units_cap = max(128, vmem_budget // per_unit_bytes)
    units = int(min(units_target, units_cap))    # pixels*images per grid step

    # Split units into (images per step, pixels per step).
    if HW >= units:
        nb = 1
        tk = max(128, (min(units, HW) // 128) * 128)    # multiple of 128
    else:
        tk = HW                                          # full pixel row/image
        nb = max(1, min(N, units // max(HW, 1)))

    # v7x has 2 TensorCores: keep >= 4 grid steps where possible so both are fed.
    if small_vmem:
        for _ in range(16):
            steps = (-(-N // nb)) * (-(-HW // tk))
            if steps >= 4:
                break
            if tk > 128 and HW > 128:
                tk = max(128, (tk // 2) // 128 * 128)
            elif nb > 1:
                nb = max(1, nb // 2)
            else:
                break

    grid = (pl.cdiv(N, nb), pl.cdiv(HW, tk))

    # --- operands -------------------------------------------------------------
    x3d = x_nchw.reshape(N, C, HW)                       # free view
    w1t = jnp.asarray(w1).astype(x_nchw.dtype).T         # (Ch, C); MXU accums f32
    b1c = jnp.asarray(b1, jnp.float32).reshape(Ch, 1)
    w2c = jnp.asarray(w2, jnp.float32).reshape(Ch, 1)
    b2c = jnp.asarray(b2, jnp.float32).reshape(1)        # scalar, lives in SMEM

    est_usage = per_unit_bytes * nb * tk + (2 << 20)     # + weights / misc
    vmem_limit = int(min(vmem_cap // 2, max(est_usage + (8 << 20), 32 << 20)))

    out3d = pl.pallas_call(
        palayer_kernel,
        out_shape=jax.ShapeDtypeStruct((N, C, HW), x_nchw.dtype),
        grid_spec=pltpu.PrefetchScalarGridSpec(
            num_scalar_prefetch=0,
            grid=grid,
            in_specs=[
                pl.BlockSpec((nb, C, tk), lambda i, j: (i, 0, j)),   # x slab
                pl.BlockSpec((Ch, C), lambda i, j: (0, 0)),          # w1^T (resident)
                pl.BlockSpec((Ch, 1), lambda i, j: (0, 0)),          # b1
                pl.BlockSpec((Ch, 1), lambda i, j: (0, 0)),          # w2
                pl.BlockSpec(memory_space=pltpu.MemorySpace.SMEM),   # b2 scalar
            ],
            out_specs=pl.BlockSpec((nb, C, tk), lambda i, j: (i, 0, j)),
        ),
        compiler_params=pltpu.CompilerParams(
            dimension_semantics=("parallel", "parallel"),
            vmem_limit_bytes=vmem_limit,
        ),
    )(x3d, w1t, b1c, w2c, b2c)

    return out3d.reshape(N, C, H, W)


def palayer_ref(x_nchw, w1, b1, w2, b2):
    """Pure-JAX reference matching the PyTorch forward (NCHW throughout)."""
    N, C, H, W = x_nchw.shape
    xf = x_nchw.astype(jnp.float32).reshape(N, C, H * W)
    h = jnp.maximum(jnp.einsum('cd,ncp->ndp', w1.astype(jnp.float32), xf)
                    + b1.astype(jnp.float32).reshape(1, -1, 1), 0.0)
    y = jax.nn.sigmoid(jnp.einsum('do,ndp->nop', w2.astype(jnp.float32), h)
                       + b2.astype(jnp.float32).reshape(1, 1, 1))
    out = xf * y
    return out.reshape(N, C, H, W).astype(x_nchw.dtype)


if __name__ == "__main__":
    # channel must be >= 8 so that channel // 8 >= 1, as in the PyTorch module.
    N, C, H, W = 2, 16, 16, 16
    Ch = C // 8

    key = jax.random.PRNGKey(0)
    kx, kw1, kb1, kw2, kb2 = jax.random.split(key, 5)

    x = jax.random.normal(kx, (N, C, H, W), dtype=jnp.float32)
    # Conv2d(channel, channel//8, 1): weight (Ch, C, 1, 1) -> matmul form (C, Ch)
    w1 = jax.random.normal(kw1, (C, Ch), dtype=jnp.float32) * 0.1
    b1 = jax.random.normal(kb1, (Ch,), dtype=jnp.float32) * 0.1
    # Conv2d(channel//8, 1, 1): weight (1, Ch, 1, 1) -> matmul form (Ch, 1)
    w2 = jax.random.normal(kw2, (Ch, 1), dtype=jnp.float32) * 0.1
    b2 = jax.random.normal(kb2, (1,), dtype=jnp.float32) * 0.1

    out = palayer(x, w1, b1, w2, b2)
    out = jax.block_until_ready(out)

    ref = palayer_ref(x, w1, b1, w2, b2)
    assert out.shape == x.shape
    assert jnp.allclose(out, ref, atol=1e-5, rtol=1e-5), "mismatch vs reference"

    print("KERNEL_OK")
</pallas_src>

<mosaic_0001>
module attributes {stable_mosaic.version = 11 : i64} {
  func.func @palayer_kernel(%arg0: i32, %arg1: i32, %arg2: memref<1x16x128xf32, #tpu.memory_space<vmem>>, %arg3: memref<2x16xf32, #tpu.memory_space<vmem>>, %arg4: memref<2x1xf32, #tpu.memory_space<vmem>>, %arg5: memref<2x1xf32, #tpu.memory_space<vmem>>, %arg6: memref<1xf32, #tpu.memory_space<smem>>, %arg7: memref<1x16x128xf32, #tpu.memory_space<vmem>>) attributes {dimension_semantics = [#tpu.dimension_semantics<parallel>, #tpu.dimension_semantics<parallel>], iteration_bounds = array<i64: 2, 2>, scalar_prefetch = 0 : i64, scratch_operands = 0 : i64, tpu.core_type = #tpu.core_type<tc>, window_params = [{transform_indices = @transform_0, window_bounds = array<i64: 1, 16, 128>}, {pipeline_mode = #tpu.pipeline_mode<synchronous>, transform_indices = @transform_1, window_bounds = array<i64: 2, 16>}, {pipeline_mode = #tpu.pipeline_mode<synchronous>, transform_indices = @transform_2, window_bounds = array<i64: 2, 1>}, {pipeline_mode = #tpu.pipeline_mode<synchronous>, transform_indices = @transform_3, window_bounds = array<i64: 2, 1>}, {transform_indices = @transform_4, window_bounds = array<i64: 1>}, {transform_indices = @transform_5, window_bounds = array<i64: 1, 16, 128>}]} {
    %c0 = arith.constant 0 : index
    %c0_0 = arith.constant 0 : index
    %0 = vector.load %arg3[%c0, %c0_0] : memref<2x16xf32, #tpu.memory_space<vmem>>, vector<2x16xf32>
    %c0_1 = arith.constant 0 : index
    %c0_2 = arith.constant 0 : index
    %1 = vector.load %arg4[%c0_1, %c0_2] : memref<2x1xf32, #tpu.memory_space<vmem>>, vector<2x1xf32>
    %c0_3 = arith.constant 0 : index
    %c0_4 = arith.constant 0 : index
    %2 = vector.load %arg5[%c0_3, %c0_4] : memref<2x1xf32, #tpu.memory_space<vmem>>, vector<2x1xf32>
    %c0_5 = arith.constant 0 : index
    %3 = memref.load %arg6[%c0_5] : memref<1xf32, #tpu.memory_space<smem>>
    %c0_i32 = arith.constant 0 : i32
    %4 = arith.index_cast %c0_i32 : i32 to index
    %c0_6 = arith.constant 0 : index
    %c0_7 = arith.constant 0 : index
    %5 = vector.load %arg2[%4, %c0_6, %c0_7] : memref<1x16x128xf32, #tpu.memory_space<vmem>>, vector<1x16x128xf32>
    %6 = vector.shape_cast %5 : vector<1x16x128xf32> to vector<16x128xf32>
    %cst = arith.constant dense<0.000000e+00> : vector<2x128xf32>
    %7 = tpu.matmul %0, %6, %cst {dimension_numbers = #tpu.dot_dimension_numbers<[1], [0], [0], [1], [0, 0, 1, 1], [], []>} : vector<2x16xf32>, vector<16x128xf32>, vector<2x128xf32> -> vector<2x128xf32>
    %8 = vector.broadcast %1 : vector<2x1xf32> to vector<2x128xf32>
    %9 = arith.addf %7, %8 : vector<2x128xf32>
    %cst_8 = arith.constant 0.000000e+00 : f32
    %10 = vector.broadcast %cst_8 : f32 to vector<2x128xf32>
    %11 = arith.maximumf %9, %10 : vector<2x128xf32>
    %12 = vector.broadcast %2 : vector<2x1xf32> to vector<2x128xf32>
    %13 = arith.mulf %11, %12 : vector<2x128xf32>
    %cst_9 = arith.constant dense<0.000000e+00> : vector<128xf32>
    %14 = vector.multi_reduction <add>, %13, %cst_9 [0] : vector<2x128xf32> to vector<128xf32>
    %15 = vector.shape_cast %14 : vector<128xf32> to vector<1x128xf32>
    %16 = vector.broadcast %3 : f32 to vector<1x128xf32>
    %17 = arith.addf %15, %16 : vector<1x128xf32>
    %18 = arith.negf %17 : vector<1x128xf32>
    %19 = math.exp %18 : vector<1x128xf32>
    %cst_10 = arith.constant 1.000000e+00 : f32
    %20 = vector.broadcast %cst_10 : f32 to vector<1x128xf32>
    %21 = arith.addf %20, %19 : vector<1x128xf32>
    %22 = arith.divf %20, %21 : vector<1x128xf32>
    %23 = vector.broadcast %22 : vector<1x128xf32> to vector<16x128xf32>
    %24 = arith.mulf %6, %23 : vector<16x128xf32>
    %25 = arith.index_cast %c0_i32 : i32 to index
    %c0_11 = arith.constant 0 : index
    %c0_12 = arith.constant 0 : index
    %26 = vector.load %arg7[%25, %c0_11, %c0_12] : memref<1x16x128xf32, #tpu.memory_space<vmem>>, vector<1x16x128xf32>
    %27 = vector.shape_cast %26 : vector<1x16x128xf32> to vector<16x128xf32>
    %28 = vector.shape_cast %24 : vector<16x128xf32> to vector<1x16x128xf32>
    tpu.vector_store %arg7[%25, %c0_11, %c0_12], %28 {strides = array<i32>} : memref<1x16x128xf32, #tpu.memory_space<vmem>>, vector<1x16x128xf32>,
    %c1_i32 = arith.constant 1 : i32
    return
  }
  func.func @transform_0(%arg0: i32, %arg1: i32) -> (i32, i32, i32) {
    %c0_i32 = arith.constant 0 : i32
    %c0_i32_0 = arith.constant 0 : i32
    return %arg0, %c0_i32, %arg1 : i32, i32, i32
  }
  func.func @transform_1(%arg0: i32, %arg1: i32) -> (i32, i32) {
    %c0_i32 = arith.constant 0 : i32
    %c0_i32_0 = arith.constant 0 : i32
    %c0_i32_1 = arith.constant 0 : i32
    return %c0_i32, %c0_i32_0 : i32, i32
  }
  func.func @transform_2(%arg0: i32, %arg1: i32) -> (i32, i32) {
    %c0_i32 = arith.constant 0 : i32
    %c0_i32_0 = arith.constant 0 : i32
    %c0_i32_1 = arith.constant 0 : i32
    return %c0_i32, %c0_i32_0 : i32, i32
  }
  func.func @transform_3(%arg0: i32, %arg1: i32) -> (i32, i32) {
    %c0_i32 = arith.constant 0 : i32
    %c0_i32_0 = arith.constant 0 : i32
    %c0_i32_1 = arith.constant 0 : i32
    return %c0_i32, %c0_i32_0 : i32, i32
  }
  func.func @transform_4(%arg0: i32, %arg1: i32) -> i32 {
    %c0_i32 = arith.constant 0 : i32
    %c0_i32_0 = arith.constant 0 : i32
    return %c0_i32 : i32
  }
  func.func @transform_5(%arg0: i32, %arg1: i32) -> (i32, i32, i32) {
    %c0_i32 = arith.constant 0 : i32
    %c0_i32_0 = arith.constant 0 : i32
    return %arg0, %c0_i32, %arg1 : i32, i32, i32
  }
}

</mosaic_0001>

<llo_original>
// kernel: tpu_custom_call.1
$region0: #{tpu_custom_call.1}
  #allocation0 [shape = 'u32[]', space=smem, size = 0x4, offset = 0x4, fixed_abs, tag = 'smem constant byte address 0x4 - core index']
  #allocation1 [shape = 'u32[72,128]{1,0:T(1,128)}', space=vmem, size = 0x9000, scoped, tag = 'internal scratch']
  #allocation2 [shape = 'f32[1]{0:T(128)S(6)}', space=smem, size = 0x200, scoped, tag = 'scoped memory for tpu_custom_call.1']
  %s0 = inlined_call_operand.hbm [shape: f32[2,16,256], index: 0, kind: input, shape index: {}]
  %s1 = inlined_call_operand.vmem [shape: f32[2,16], index: 1, kind: input, shape index: {}]
  %s2 = inlined_call_operand.vmem [shape: f32[2,1], index: 2, kind: input, shape index: {}]
  %s3 = inlined_call_operand.vmem [shape: f32[2,1], index: 3, kind: input, shape index: {}]
  %s4 = inlined_call_operand.<no memory space> [shape: f32[1], index: 4, kind: input, shape index: {}]
  %s5 = inlined_call_operand.hbm [shape: f32[2,16,256], index: 5, kind: output, shape index: {}]
  %s6 = sld [smem:[#allocation0]]
  $region57: #{tpu_custom_call.1} parent=0
    _
  %s8 = ssub.s32 1, %s6
  %s9 = scalar_select 0, %s8, %s6
  %10 = sst [smem:[#allocation2]] %s4
  $region1: #{tpu_custom_call.1} parent=0
    #allocation3 [shape = 'u8[16384]{0}', space=vmem, size = 0x4000, scoped, tag = 'input window, operand 0']
    #allocation4 [shape = 's32[2]{0}', space=sflag, size = 0x8, scoped, tag = 'scoped memory for tpu_custom_call.1']
    #allocation5 [shape = 's32[2]{0}', space=sflag, size = 0x8, scoped, tag = 'scoped memory for tpu_custom_call.1']
    #allocation6 [shape = 'u8[16384]{0}', space=vmem, size = 0x4000, scoped, tag = 'output window, operand 0']
    %11 = vsyncpa [#allocation4], 0
    %s12 = scalar_lea.sflag [#allocation4], 1
    %13 = vsyncpa %s12, 0
    %14 = vsyncpa [#allocation5], 0
    %s15 = scalar_lea.sflag [#allocation5], 1
    %16 = vsyncpa %s15, 0
    loop: start=0, step=1, limit=6
    $region2: #{tpu_custom_call.1} parent=1 // loop_pre_header
      _
    $region3: #{tpu_custom_call.1} parent=1 // loop_header
      %s18 = sphi 0, %s22
      %p19 = scmp.ge.s32.totalorder %s18, 6
      %s25 = sphi 0, %s37
      %s26 = sphi 0, %s33
      %s27 = sphi 0, %s25
      %s28 = sphi 0, %s26
      %s29 = sphi 0, %s27
      %s30 = sphi 0, %s28
      %s42 = sphi 0, %s44
      %s45 = sphi 0, %s42
      %s46 = sphi 0, %s45
      %s62 = sphi 0, %s46
      %s66 = sphi 0, %s66
      %s68 = sphi 0, %s66
      %s69 = sphi 0, %s68
      %s83 = sphi 0, %s69
      %s87 = sphi 0, %s87
      %s89 = sphi 0, %s87
      %s90 = sphi 0, %s89
      %s104 = sphi 0, %s90
      %s108 = sphi 0, %s108
      %s110 = sphi 0, %s108
      %s111 = sphi 0, %s110
      %s125 = sphi 0, %s111
      %s129 = sphi 0, %s129
      %s131 = sphi 0, %s129
      %s132 = sphi 0, %s131
      %s146 = sphi 0, %s132
      %s154 = sphi 0, %s156
      %s157 = sphi 0, %s154
      %s158 = sphi 0, %s157
      %s174 = sphi 0, %s158
    $region4: #{tpu_custom_call.1} parent=1 // loop_header_branch
      %21 = sbr.rel (%p19) target = $region8
    $region5: #{tpu_custom_call.1} parent=1 // loop_body
      %s23 = ssub.s32 %s18, 1
      %s24 = ssub.s32 %s18, 2
      %s31 = sadd.s32 1, %s26
      %p32 = scmp.ge.s32.totalorder %s31, 2
      %s33 = scalar_select %p32, 0, %s31
      %s34 = sadd.s32 1, %s25
      %s35 = scalar_select %p32, %s34, %s25
      %p36 = scmp.ge.s32.totalorder %s35, 2
      %s37 = scalar_select %p36, 0, %s35
      %s38 = ssub.s32 %s25, %s37
      %s39 = ssub.s32 %s26, %s33
      %s40 = sor.u32 %s38, %s39
      %p41 = scmp.eq.s32.totalorder %s40, 0
      %s43 = sadd.s32 %s42, 1
      %s44 = scalar_select %p41, %s42, %s43
      %p47 = pneg %p41
      %p48 = scmp.eq.s32.totalorder %s18, 3
      %p49 = por %p47, %p48
      %p50 = scmp.ne.s32.totalorder %s42, %s45
      %p51 = scmp.eq.s32.totalorder %s18, 0
      %p52 = por %p50, %p51
      %p53 = scmp.ne.s32.totalorder %s42, %s45
      %p54 = scmp.eq.s32.totalorder %s23, 3
      %p55 = por %p53, %p54
      %p56 = scmp.ne.s32.totalorder %s45, %s46
      %p57 = scmp.eq.s32.totalorder %s23, 0
      %p58 = por %p56, %p57
      %p59 = scmp.ne.s32.totalorder %s45, %s46
      %p60 = scmp.eq.s32.totalorder %s24, 3
      %p61 = por %p59, %p60
      %p63 = scmp.ne.s32.totalorder %s46, %s62
      %p64 = scmp.eq.s32.totalorder %s24, 0
      %p65 = por %p63, %p64
      %s67 = sadd.s32 %s66, 1
      %p70 = scmp.eq.s32.totalorder %s18, 3
      %p71 = scmp.ne.s32.totalorder %s66, %s68
      %p72 = scmp.eq.s32.totalorder %s18, 0
      %p73 = por %p71, %p72
      %p74 = scmp.ne.s32.totalorder %s66, %s68
      %p75 = scmp.eq.s32.totalorder %s23, 3
      %p76 = por %p74, %p75
      %p77 = scmp.ne.s32.totalorder %s68, %s69
      %p78 = scmp.eq.s32.totalorder %s23, 0
      %p79 = por %p77, %p78
      %p80 = scmp.ne.s32.totalorder %s68, %s69
      %p81 = scmp.eq.s32.totalorder %s24, 3
      %p82 = por %p80, %p81
      %p84 = scmp.ne.s32.totalorder %s69, %s83
      %p85 = scmp.eq.s32.totalorder %s24, 0
      %p86 = por %p84, %p85
      %s88 = sadd.s32 %s87, 1
      %p91 = scmp.eq.s32.totalorder %s18, 3
      %p92 = scmp.ne.s32.totalorder %s87, %s89
      %p93 = scmp.eq.s32.totalorder %s18, 0
      %p94 = por %p92, %p93
      %p95 = scmp.ne.s32.totalorder %s87, %s89
      %p96 = scmp.eq.s32.totalorder %s23, 3
      %p97 = por %p95, %p96
      %p98 = scmp.ne.s32.totalorder %s89, %s90
      %p99 = scmp.eq.s32.totalorder %s23, 0
      %p100 = por %p98, %p99
      %p101 = scmp.ne.s32.totalorder %s89, %s90
      %p102 = scmp.eq.s32.totalorder %s24, 3
      %p103 = por %p101, %p102
      %p105 = scmp.ne.s32.totalorder %s90, %s104
      %p106 = scmp.eq.s32.totalorder %s24, 0
      %p107 = por %p105, %p106
      %s109 = sadd.s32 %s108, 1
      %p112 = scmp.eq.s32.totalorder %s18, 3
      %p113 = scmp.ne.s32.totalorder %s108, %s110
      %p114 = scmp.eq.s32.totalorder %s18, 0
      %p115 = por %p113, %p114
      %p116 = scmp.ne.s32.totalorder %s108, %s110
      %p117 = scmp.eq.s32.totalorder %s23, 3
      %p118 = por %p116, %p117
      %p119 = scmp.ne.s32.totalorder %s110, %s111
      %p120 = scmp.eq.s32.totalorder %s23, 0
      %p121 = por %p119, %p120
      %p122 = scmp.ne.s32.totalorder %s110, %s111
      %p123 = scmp.eq.s32.totalorder %s24, 3
      %p124 = por %p122, %p123
      %p126 = scmp.ne.s32.totalorder %s111, %s125
      %p127 = scmp.eq.s32.totalorder %s24, 0
      %p128 = por %p126, %p127
      %s130 = sadd.s32 %s129, 1
      %p133 = scmp.eq.s32.totalorder %s18, 3
      %p134 = scmp.ne.s32.totalorder %s129, %s131
      %p135 = scmp.eq.s32.totalorder %s18, 0
      %p136 = por %p134, %p135
      %p137 = scmp.ne.s32.totalorder %s129, %s131
      %p138 = scmp.eq.s32.totalorder %s23, 3
      %p139 = por %p137, %p138
      %p140 = scmp.ne.s32.totalorder %s131, %s132
      %p141 = scmp.eq.s32.totalorder %s23, 0
      %p142 = por %p140, %p141
      %p143 = scmp.ne.s32.totalorder %s131, %s132
      %p144 = scmp.eq.s32.totalorder %s24, 3
      %p145 = por %p143, %p144
      %p147 = scmp.ne.s32.totalorder %s132, %s146
      %p148 = scmp.eq.s32.totalorder %s24, 0
      %p149 = por %p147, %p148
      %s150 = ssub.s32 %s25, %s37
      %s151 = ssub.s32 %s26, %s33
      %s152 = sor.u32 %s150, %s151
      %p153 = scmp.eq.s32.totalorder %s152, 0
      %s155 = sadd.s32 %s154, 1
      %s156 = scalar_select %p153, %s154, %s155
      %p159 = pneg %p153
      %p160 = scmp.eq.s32.totalorder %s18, 3
      %p161 = por %p159, %p160
      %p162 = scmp.ne.s32.totalorder %s154, %s157
      %p163 = scmp.eq.s32.totalorder %s18, 0
      %p164 = por %p162, %p163
      %p165 = scmp.ne.s32.totalorder %s154, %s157
      %p166 = scmp.eq.s32.totalorder %s23, 3
      %p167 = por %p165, %p166
      %p168 = scmp.ne.s32.totalorder %s157, %s158
      %p169 = scmp.eq.s32.totalorder %s23, 0
      %p170 = por %p168, %p169
      %p171 = scmp.ne.s32.totalorder %s157, %s158
      %p172 = scmp.eq.s32.totalorder %s24, 3
      %p173 = por %p171, %p172
      %p175 = scmp.ne.s32.totalorder %s158, %s174
      %p176 = scmp.eq.s32.totalorder %s24, 0
      %p177 = por %p175, %p176
      %p178 = scmp.le.s32.totalorder 1, %s18
      %p179 = scmp.lt.s32.totalorder %s18, 5
      %p180 = pnand %p178, %p179
      %p181 = pneg %p180
      // Predicated region
      $region9: #{tpu_custom_call.1} parent=5 // pred_check
        _
      $region10: #{tpu_custom_call.1} parent=5 // pred_check_branch
        %183 = sbr.rel (%p180) target = $region12
      $region11: #{tpu_custom_call.1} parent=5 // pred_region
        %s184 = ssub.s32 %s18, 1
        // Predicated region
        $region13: #{tpu_custom_call.1} parent=11 // pred_check
          %p185 = pneg %p79
        $region14: #{tpu_custom_call.1} parent=11 // pred_check_branch
          %187 = sbr.rel (%p185) target = $region16
        $region15: #{tpu_custom_call.1} parent=11 // pred_region
          _
        $region16: #{tpu_custom_call.1} parent=11 // pred_fallthru
          _
        // Predicated region
        $region17: #{tpu_custom_call.1} parent=11 // pred_check
          %p188 = pneg %p100
        $region18: #{tpu_custom_call.1} parent=11 // pred_check_branch
          %190 = sbr.rel (%p188) target = $region20
        $region19: #{tpu_custom_call.1} parent=11 // pred_region
          _
        $region20: #{tpu_custom_call.1} parent=11 // pred_fallthru
          _
        // Predicated region
        $region21: #{tpu_custom_call.1} parent=11 // pred_check
          %p191 = pneg %p121
        $region22: #{tpu_custom_call.1} parent=11 // pred_check_branch
          %193 = sbr.rel (%p191) target = $region24
        $region23: #{tpu_custom_call.1} parent=11 // pred_region
          _
        $region24: #{tpu_custom_call.1} parent=11 // pred_fallthru
          _
        // Predicated region
        $region25: #{tpu_custom_call.1} parent=11 // pred_check
          %p194 = pneg %p142
        $region26: #{tpu_custom_call.1} parent=11 // pred_check_branch
          %196 = sbr.rel (%p194) target = $region28
        $region27: #{tpu_custom_call.1} parent=11 // pred_region
          _
        $region28: #{tpu_custom_call.1} parent=11 // pred_fallthru
          _
      $region12: #{tpu_custom_call.1} parent=5 // pred_fallthru
        _
      %p197 = scmp.lt.s32.totalorder %s18, 4
      // Predicated region
      $region29: #{tpu_custom_call.1} parent=5 // pred_check
        %p198 = pneg %p197
      $region30: #{tpu_custom_call.1} parent=5 // pred_check_branch
        %200 = sbr.rel (%p198) target = $region32
      $region31: #{tpu_custom_call.1} parent=5 // pred_region
        // Predicated region
        $region33: #{tpu_custom_call.1} parent=31 // pred_check
          %p201 = pneg %p52
        $region34: #{tpu_custom_call.1} parent=31 // pred_check_branch
          %203 = sbr.rel (%p201) target = $region36
        $region35: #{tpu_custom_call.1} parent=31 // pred_region
          %s204 = sand.u32 %s42, 1
          %s205 = scalar_lea.sflag [#allocation4], %s204
          %s206 = sand.u32 %s42, 1
          %s207 = smul.addr %s206, 16
          %s208 = scalar_lea.vmem [#allocation3], %s207
          %210 = vsyncadd %s205, 0
          %s211 = smul.addr %s25, 4
          %s212 = sadd.s32 %s26, %s211
          %s213 = smul.addr %s212, 8
          %s214 = scalar_lea.hbm %s0, %s213
          %s215 = sshll.u32 %s214, 4
          %s216 = int_to_ptr.hbm [resolvable:$true] %s215
          %s217 = sshll.u32 %s208, 4
          %s218 = int_to_ptr.vmem [resolvable:$true] %s217
          %223 = dma.hbm_to_vmem [thread:$0]  %s216, 256, %s218, %s205, 256, 128, 8
        $region36: #{tpu_custom_call.1} parent=31 // pred_fallthru
          _
      $region32: #{tpu_custom_call.1} parent=5 // pred_fallthru
        _
      %p224 = scmp.le.s32.totalorder 1, %s18
      %p225 = scmp.lt.s32.totalorder %s18, 5
      %p226 = pnand %p224, %p225
      %p227 = pneg %p226
      // Predicated region
      $region37: #{tpu_custom_call.1} parent=5 // pred_check
        _
      $region38: #{tpu_custom_call.1} parent=5 // pred_check_branch
        %229 = sbr.rel (%p226) target = $region40
      $region39: #{tpu_custom_call.1} parent=5 // pred_region
        %s230 = ssub.s32 %s18, 1
        %s231 = sand.u32 %s45, 1
        %s232 = scalar_lea.sflag [#allocation4], %s231
        %s233 = sand.u32 %s45, 1
        %s234 = smul.addr %s233, 16
        %s235 = scalar_lea.vmem [#allocation3], %s234
        // Predicated region
        $region41: #{tpu_custom_call.1} parent=39 // pred_check
          %p236 = pneg %p58
        $region42: #{tpu_custom_call.1} parent=39 // pred_check_branch
          %238 = sbr.rel (%p236) target = $region44
        $region43: #{tpu_custom_call.1} parent=39 // pred_region
          %240 = dma.done %s232, 256
        $region44: #{tpu_custom_call.1} parent=39 // pred_fallthru
          _
        %s241 = sand.u32 %s45, 1
        %s242 = scalar_lea.sflag [#allocation4], %s241
        %s243 = sand.u32 %s45, 1
        %s244 = smul.addr %s243, 16
        %s245 = scalar_lea.vmem [#allocation3], %s244
        %p246 = pneg %p58
        %p247 = pneg %p55
        %p248 = pneg %p79
        %p249 = pneg %p76
        %p250 = pneg %p100
        %p251 = pneg %p97
        %p252 = pneg %p121
        %p253 = pneg %p118
        %p254 = pneg %p142
        %p255 = pneg %p139
        %p256 = pneg %p170
        %p257 = pneg %p167
        %s258 = sand.u32 %s157, 1
        %s259 = scalar_lea.sflag [#allocation5], %s258
        %s260 = sand.u32 %s157, 1
        %s261 = smul.addr %s260, 16
        %s262 = scalar_lea.vmem [#allocation6], %s261
        %v263 = vld [vmem:[%s1] sm:$0x3]
        %v264 = vld [vmem:[%s2] sm:$0x3]
        %v265 = vld [vmem:[%s3] sm:$0x3]
        %s266 = sld [smem:[#allocation2]]
        %v267 = vld [vmem:[%s235] sm:$0xff]
        %v268 = vld [vmem:[%s235 + $0x8] sm:$0xff]
        %270 = vset.pattern.permute.xlu0 0
        %271 = vperm.xlu0 %270, %v264
        %v272 = vpop.permute.xlu0 %271
        %vm274 = vcmask 130048
        %v276 = vsel %vm274, %v263, 0
        %278 = vmatpush.msra.mxu0 0.0
        %279 = vmatpush.msra.mxu0 0.0
        %280 = vmatpush.msra.mxu0 0.0
        %281 = vmatpush.msra.mxu0 0.0
        %282 = vmatpush.msra.mxu0 0.0
        %283 = vmatpush.msra.mxu0 0.0
        %284 = vmatpush.msra.mxu0 0.0
        %285 = vmatpush.msra.mxu0 0.0
        %286 = vmatpush.msra.mxu0 0.0
        %287 = vmatpush.msra.mxu0 0.0
        %288 = vmatpush.msra.mxu0 0.0
        %289 = vmatpush.msra.mxu0 0.0
        %290 = vmatpush.msra.mxu0 0.0
        %291 = vmatpush.msra.mxu0 0.0
        %292 = vmatpush.msra.mxu0 %v268
        %293 = vmatpush.msra.mxu0 %v267
        %294 = vmatmul.f32.gmra.mxu0 %v276
        %v295 = vpop.f32.mrf.mxu0
        %v296 = vadd.f32 %v272, %v295
        %297 = vdwg.mxu0
        %v298 = vmax.f32 %v296, 0.0
        %300 = vset.pattern.permute.xlu0 0
        %301 = vperm.xlu0 %300, %v265
        %v302 = vpop.permute.xlu0 %301
        %v304 = vmul.f32 %v298, %v302
        %vm305 = vcmask 1041408
        %v306 = vsel %vm305, %v304, 0.0
        %v307 = vrot.slane %v306, 4
        %v308 = vadd.f32 %v306, %v307
        %v309 = vrot.slane %v308, 2
        %v310 = vadd.f32 %v308, %v309
        %v311 = vrot.slane %v310, 1
        %v312 = vadd.f32 %v310, %v311
        %v313 = vstv %s266
        %v314 = vadd.f32 %v312, %v313
        %v315 = vxor.u32 %v314, 2147483648
        %v316 = vmul.f32 %v315, 1.442695
        %v317 = vpow.pop %v316
        %v318 = vadd.f32 %v317, 1.0
        %v319 = vrcp.pop %v318
        %v320 = vmul.f32 %v318, %v319
        %v321 = vsub.f32 1.0, %v320
        %v322 = vmul.f32 %v319, %v321
        %v323 = vadd.f32 %v319, %v322
        %vm324 = vweird.f32 %v318
        %vm325 = vweird.f32 %v319
        %vm326 = vmor %vm324, %vm325
        %v327 = vsel %vm326, %v319, %v323
        %v328 = vand.u32 2147483647, %v318
        %vm329 = vcmp.eq.f32.partialorder %v328, 8.507059e+37
        %v330 = vand.u32 %v318, 2147483648
        %v331 = vor.u32 1.1754944e-38, %v330
        %v332 = vsel %vm329, %v331, %v327
        %v333 = vmul.f32 1.0, %v332
        %v334 = vmul.f32 %v267, %v333
        %v335 = vmul.f32 %v268, %v333
        %336 = vst [vmem:[%s262] sm:$0xff] %v334
        %337 = vst [vmem:[%s262 + $0x8] sm:$0xff] %v335
        %s338 = sand.u32 %s157, 1
        %s339 = scalar_lea.sflag [#allocation5], %s338
        %s340 = sand.u32 %s157, 1
        %s341 = smul.addr %s340, 16
        %s342 = scalar_lea.vmem [#allocation6], %s341
        // Predicated region
        $region45: #{tpu_custom_call.1} parent=39 // pred_check
          %p343 = pneg %p167
        $region46: #{tpu_custom_call.1} parent=39 // pred_check_branch
          %345 = sbr.rel (%p343) target = $region48
        $region47: #{tpu_custom_call.1} parent=39 // pred_region
          %347 = vsyncadd %s339, 0
          %s348 = smul.addr %s27, 4
          %s349 = sadd.s32 %s28, %s348
          %s350 = smul.addr %s349, 8
          %s351 = scalar_lea.hbm %s5, %s350
          %s352 = sshll.u32 %s342, 4
          %s353 = int_to_ptr.vmem [resolvable:$true] %s352
          %s354 = sshll.u32 %s351, 4
          %s355 = int_to_ptr.hbm [resolvable:$true] %s354
          %360 = dma.vmem_to_hbm [thread:$0]  %s353, 256, %s355, %s339, 128, 256, 8
        $region48: #{tpu_custom_call.1} parent=39 // pred_fallthru
          _
      $region40: #{tpu_custom_call.1} parent=5 // pred_fallthru
        _
      %p361 = scmp.le.s32.totalorder 2, %s18
      // Predicated region
      $region49: #{tpu_custom_call.1} parent=5 // pred_check
        %p362 = pneg %p361
      $region50: #{tpu_custom_call.1} parent=5 // pred_check_branch
        %364 = sbr.rel (%p362) target = $region52
      $region51: #{tpu_custom_call.1} parent=5 // pred_region
        %s365 = ssub.s32 %s18, 2
        // Predicated region
        $region53: #{tpu_custom_call.1} parent=51 // pred_check
          %p366 = pneg %p173
        $region54: #{tpu_custom_call.1} parent=51 // pred_check_branch
          %368 = sbr.rel (%p366) target = $region56
        $region55: #{tpu_custom_call.1} parent=51 // pred_region
          %s369 = sand.u32 %s158, 1
          %s370 = scalar_lea.sflag [#allocation5], %s369
          %s371 = sand.u32 %s158, 1
          %s372 = smul.addr %s371, 16
          %s373 = scalar_lea.vmem [#allocation6], %s372
          %375 = dma.done %s370, 256
        $region56: #{tpu_custom_call.1} parent=51 // pred_fallthru
          _
      $region52: #{tpu_custom_call.1} parent=5 // pred_fallthru
        _
    $region6: #{tpu_custom_call.1} parent=1 // loop_footer
      %s22 = sadd.s32 1, %s18
    $region7: #{tpu_custom_call.1} parent=1 // loop_footer_branch
      %17 = sbr.rel target = $region3
    $region8: #{tpu_custom_call.1} parent=1 // loop_exit
      _
    %376 = vsyncpa [#allocation4], 1
    %s377 = scalar_lea.sflag [#allocation4], 1
    %378 = vsyncpa %s377, 1
    %379 = vsyncpa [#allocation5], 1
    %s380 = scalar_lea.sflag [#allocation5], 1
    %381 = vsyncpa %s380, 1

</llo_original>
